<compile_context>
chip_gen: v6e
topology: v6e:2x2x1
jax: 0.10.0
libtpu: 0.0.40
codegen_flags: <defaults>
</compile_context>

<pallas_src>
import functools

import jax
import jax.numpy as jnp
from jax import lax
from jax.experimental import pallas as pl
from jax.experimental.pallas import tpu as pltpu


def _joint_l1_kernel(src_ref, tgt_ref,          # scalar prefetch (SMEM, int32[N])
                     pred_ref, tjt_ref, w_ref,  # VMEM: [Q,J*C], [M,J*C], [M,J*C]
                     fcnt_ref,                  # SMEM: f32[M] per-row flag counts
                     out_ref,                   # SMEM: f32[1,1]
                     *, n, jc, weight, eps, unroll):
    """Fused gather + (flags/sqrt(area))-weighted L1, masked mean."""

    def body(i, carry):
        acc, den = carry
        si = src_ref[i]
        ti = tgt_ref[i]
        p = pred_ref[pl.ds(si, 1), :]          # [1, J*C]
        t = tjt_ref[pl.ds(ti, 1), :]           # [1, J*C]
        w = w_ref[pl.ds(ti, 1), :]             # [1, J*C]  flags/(sqrt(area)+eps)
        acc = acc + jnp.abs(p - t) * w         # single carried vadd
        den = den + fcnt_ref[ti]               # scalar SMEM read + add
        return acc, den

    acc0 = jnp.zeros((1, jc), dtype=jnp.float32)
    acc, den = lax.fori_loop(0, n, body, (acc0, jnp.float32(0.0)),
                             unroll=unroll)
    num = jnp.sum(acc)                          # one cross-lane reduce total
    # Exact divide (approx reciprocal would break the rtol=1e-5 check).
    out_ref[0, 0] = (num / (den + eps)) * weight


def joint_l1_loss(predictions, targets, src_ids, tgt_ids, weight=1.0, eps=1e-5):
    pred_joints = predictions['joints']          # [Q, J, C]
    target_joints = targets['joints']            # [M, J, C]
    target_areas = targets['areas']              # [M]
    visible_flags = targets['visible_flags']     # [M, J]
    # targets['sigmas'] is unpacked by the PyTorch module but unused in forward.

    n = int(tgt_ids.shape[0])
    if n == 0:
        # PyTorch dummy branch: |pred[0,0] - 0| * 0 -> mean -> 0 (times weight).
        dummy = jnp.abs(pred_joints[0, 0]) * 0.0
        return dummy.mean() * weight

    Q, J, C = pred_joints.shape
    M = target_joints.shape[0]
    jc = J * C

    # Lane-dense [*, J*C] rows (free reshapes of contiguous data).
    pred2 = pred_joints.reshape(Q, jc).astype(jnp.float32)
    tjt2 = target_joints.reshape(M, jc).astype(jnp.float32)

    # Hoisted per-row weights: flags / (sqrt(area) + eps), replicated over C.
    # Computed once over all M rows (tiny vectorized op) so the kernel loop
    # contains no sqrt / divide / per-row reduction.
    flags_f = visible_flags.astype(jnp.float32)                      # [M, J]
    inv_scale = 1.0 / (jnp.sqrt(target_areas.astype(jnp.float32)) + eps)  # [M]
    w2 = (flags_f * inv_scale[:, None])[:, :, None]
    w2 = jnp.broadcast_to(w2, (M, J, C)).reshape(M, jc)              # [M, J*C]
    flag_counts = flags_f.sum(axis=-1)                               # [M]

    # Clamp ids so a bad match index can never read adjacent VMEM.
    src = jnp.clip(src_ids.astype(jnp.int32), 0, Q - 1)
    tgt = jnp.clip(tgt_ids.astype(jnp.int32), 0, M - 1)

    kernel = functools.partial(_joint_l1_kernel, n=n, jc=jc,
                               weight=float(weight), eps=float(eps),
                               unroll=max(1, min(8, n)))
    out = pl.pallas_call(
        kernel,
        out_shape=jax.ShapeDtypeStruct((1, 1), jnp.float32),
        grid_spec=pltpu.PrefetchScalarGridSpec(
            num_scalar_prefetch=2,        # src_ids, tgt_ids -> SMEM
            grid=(1,),
            in_specs=[
                pl.BlockSpec(memory_space=pltpu.MemorySpace.VMEM),  # pred2
                pl.BlockSpec(memory_space=pltpu.MemorySpace.VMEM),  # tjt2
                pl.BlockSpec(memory_space=pltpu.MemorySpace.VMEM),  # w2
                pl.BlockSpec(memory_space=pltpu.MemorySpace.SMEM),  # flag_counts
            ],
            out_specs=pl.BlockSpec(memory_space=pltpu.MemorySpace.SMEM),
        ),
        compiler_params=pltpu.CompilerParams(
            dimension_semantics=("arbitrary",)),
    )(src, tgt, pred2, tjt2, w2, flag_counts)
    return out[0, 0]


def _reference_loss(predictions, targets, src_ids, tgt_ids, weight=1.0, eps=1e-5):
    pj = predictions['joints'][src_ids]
    tj = targets['joints'][tgt_ids]
    ta = targets['areas'][tgt_ids]
    vf = targets['visible_flags'][tgt_ids]
    loss = jnp.abs(pj - tj).sum(axis=-1)
    loss = loss / (jnp.sqrt(ta)[:, None] + eps)
    loss = (loss * vf).sum() / (vf.sum() + eps)
    return loss * weight


if __name__ == "__main__":
    key = jax.random.PRNGKey(0)
    kq, kt, ka, kv = jax.random.split(key, 4)

    Q, M, J, C = 6, 5, 17, 2
    predictions = {
        'joints': jax.random.normal(kq, (Q, J, C), dtype=jnp.float32),
    }
    targets = {
        'joints': jax.random.normal(kt, (M, J, C), dtype=jnp.float32),
        'areas': jax.random.uniform(ka, (M,), dtype=jnp.float32,
                                    minval=0.5, maxval=4.0),
        'visible_flags': (jax.random.uniform(kv, (M, J)) > 0.3
                          ).astype(jnp.float32),
        'sigmas': jnp.full((J,), 0.05, dtype=jnp.float32),  # unused by forward
    }
    src_ids = jnp.array([0, 2, 3, 5], dtype=jnp.int32)
    tgt_ids = jnp.array([1, 0, 3, 2], dtype=jnp.int32)

    loss = joint_l1_loss(predictions, targets, src_ids, tgt_ids,
                         weight=1.0, eps=1e-5)
    loss = jax.block_until_ready(loss)

    ref = _reference_loss(predictions, targets, src_ids, tgt_ids,
                          weight=1.0, eps=1e-5)
    assert jnp.allclose(loss, ref, rtol=1e-5, atol=1e-5), (loss, ref)

    print("KERNEL_OK")
</pallas_src>

<mosaic_0001>
module attributes {stable_mosaic.version = 11 : i64} {
  func.func @_joint_l1_kernel(%arg0: i32, %arg1: memref<4xi32, #tpu.memory_space<smem>>, %arg2: memref<4xi32, #tpu.memory_space<smem>>, %arg3: memref<6x34xf32, #tpu.memory_space<vmem>>, %arg4: memref<5x34xf32, #tpu.memory_space<vmem>>, %arg5: memref<5x34xf32, #tpu.memory_space<vmem>>, %arg6: memref<5xf32, #tpu.memory_space<smem>>, %arg7: memref<1x1xf32, #tpu.memory_space<smem>>) attributes {dimension_semantics = [#tpu.dimension_semantics<arbitrary>], iteration_bounds = array<i64: 1>, scalar_prefetch = 2 : i64, scratch_operands = 0 : i64, tpu.core_type = #tpu.core_type<tc>, window_params = [{pipeline_mode = #tpu.pipeline_mode<synchronous>, transform_indices = @transform_0, window_bounds = array<i64: 6, 34>}, {pipeline_mode = #tpu.pipeline_mode<synchronous>, transform_indices = @transform_1, window_bounds = array<i64: 5, 34>}, {pipeline_mode = #tpu.pipeline_mode<synchronous>, transform_indices = @transform_2, window_bounds = array<i64: 5, 34>}, {transform_indices = @transform_3, window_bounds = array<i64: 5>}, {transform_indices = @transform_4, window_bounds = array<i64: 1, 1>}]} {
    %cst = arith.constant 0.000000e+00 : f32
    %0 = vector.broadcast %cst : f32 to vector<1x34xf32>
    %cst_0 = arith.constant 0.000000e+00 : f32
    %c0_i32 = arith.constant 0 : i32
    %1 = arith.index_cast %c0_i32 : i32 to index
    %2 = memref.load %arg1[%1] : memref<4xi32, #tpu.memory_space<smem>>
    %3 = arith.index_cast %c0_i32 : i32 to index
    %4 = memref.load %arg2[%3] : memref<4xi32, #tpu.memory_space<smem>>
    %5 = arith.index_cast %2 : i32 to index
    %c0 = arith.constant 0 : index
    %6 = vector.load %arg3[%5, %c0] : memref<6x34xf32, #tpu.memory_space<vmem>>, vector<1x34xf32>
    %7 = arith.index_cast %4 : i32 to index
    %c0_1 = arith.constant 0 : index
    %8 = vector.load %arg4[%7, %c0_1] : memref<5x34xf32, #tpu.memory_space<vmem>>, vector<1x34xf32>
    %9 = arith.index_cast %4 : i32 to index
    %c0_2 = arith.constant 0 : index
    %10 = vector.load %arg5[%9, %c0_2] : memref<5x34xf32, #tpu.memory_space<vmem>>, vector<1x34xf32>
    %11 = arith.subf %6, %8 : vector<1x34xf32>
    %12 = math.absf %11 : vector<1x34xf32>
    %13 = arith.mulf %12, %10 : vector<1x34xf32>
    %14 = arith.addf %0, %13 : vector<1x34xf32>
    %15 = arith.index_cast %4 : i32 to index
    %16 = memref.load %arg6[%15] : memref<5xf32, #tpu.memory_space<smem>>
    %17 = arith.addf %cst_0, %16 : f32
    %c1_i32 = arith.constant 1 : i32
    %18 = arith.index_cast %c1_i32 : i32 to index
    %19 = memref.load %arg1[%18] : memref<4xi32, #tpu.memory_space<smem>>
    %20 = arith.index_cast %c1_i32 : i32 to index
    %21 = memref.load %arg2[%20] : memref<4xi32, #tpu.memory_space<smem>>
    %22 = arith.index_cast %19 : i32 to index
    %c0_3 = arith.constant 0 : index
    %23 = vector.load %arg3[%22, %c0_3] : memref<6x34xf32, #tpu.memory_space<vmem>>, vector<1x34xf32>
    %24 = arith.index_cast %21 : i32 to index
    %c0_4 = arith.constant 0 : index
    %25 = vector.load %arg4[%24, %c0_4] : memref<5x34xf32, #tpu.memory_space<vmem>>, vector<1x34xf32>
    %26 = arith.index_cast %21 : i32 to index
    %c0_5 = arith.constant 0 : index
    %27 = vector.load %arg5[%26, %c0_5] : memref<5x34xf32, #tpu.memory_space<vmem>>, vector<1x34xf32>
    %28 = arith.subf %23, %25 : vector<1x34xf32>
    %29 = math.absf %28 : vector<1x34xf32>
    %30 = arith.mulf %29, %27 : vector<1x34xf32>
    %31 = arith.addf %14, %30 : vector<1x34xf32>
    %32 = arith.index_cast %21 : i32 to index
    %33 = memref.load %arg6[%32] : memref<5xf32, #tpu.memory_space<smem>>
    %34 = arith.addf %17, %33 : f32
    %c2_i32 = arith.constant 2 : i32
    %35 = arith.index_cast %c2_i32 : i32 to index
    %36 = memref.load %arg1[%35] : memref<4xi32, #tpu.memory_space<smem>>
    %37 = arith.index_cast %c2_i32 : i32 to index
    %38 = memref.load %arg2[%37] : memref<4xi32, #tpu.memory_space<smem>>
    %39 = arith.index_cast %36 : i32 to index
    %c0_6 = arith.constant 0 : index
    %40 = vector.load %arg3[%39, %c0_6] : memref<6x34xf32, #tpu.memory_space<vmem>>, vector<1x34xf32>
    %41 = arith.index_cast %38 : i32 to index
    %c0_7 = arith.constant 0 : index
    %42 = vector.load %arg4[%41, %c0_7] : memref<5x34xf32, #tpu.memory_space<vmem>>, vector<1x34xf32>
    %43 = arith.index_cast %38 : i32 to index
    %c0_8 = arith.constant 0 : index
    %44 = vector.load %arg5[%43, %c0_8] : memref<5x34xf32, #tpu.memory_space<vmem>>, vector<1x34xf32>
    %45 = arith.subf %40, %42 : vector<1x34xf32>
    %46 = math.absf %45 : vector<1x34xf32>
    %47 = arith.mulf %46, %44 : vector<1x34xf32>
    %48 = arith.addf %31, %47 : vector<1x34xf32>
    %49 = arith.index_cast %38 : i32 to index
    %50 = memref.load %arg6[%49] : memref<5xf32, #tpu.memory_space<smem>>
    %51 = arith.addf %34, %50 : f32
    %c3_i32 = arith.constant 3 : i32
    %52 = arith.index_cast %c3_i32 : i32 to index
    %53 = memref.load %arg1[%52] : memref<4xi32, #tpu.memory_space<smem>>
    %54 = arith.index_cast %c3_i32 : i32 to index
    %55 = memref.load %arg2[%54] : memref<4xi32, #tpu.memory_space<smem>>
    %56 = arith.index_cast %53 : i32 to index
    %c0_9 = arith.constant 0 : index
    %57 = vector.load %arg3[%56, %c0_9] : memref<6x34xf32, #tpu.memory_space<vmem>>, vector<1x34xf32>
    %58 = arith.index_cast %55 : i32 to index
    %c0_10 = arith.constant 0 : index
    %59 = vector.load %arg4[%58, %c0_10] : memref<5x34xf32, #tpu.memory_space<vmem>>, vector<1x34xf32>
    %60 = arith.index_cast %55 : i32 to index
    %c0_11 = arith.constant 0 : index
    %61 = vector.load %arg5[%60, %c0_11] : memref<5x34xf32, #tpu.memory_space<vmem>>, vector<1x34xf32>
    %62 = arith.subf %57, %59 : vector<1x34xf32>
    %63 = math.absf %62 : vector<1x34xf32>
    %64 = arith.mulf %63, %61 : vector<1x34xf32>
    %65 = arith.addf %48, %64 : vector<1x34xf32>
    %66 = arith.index_cast %55 : i32 to index
    %67 = memref.load %arg6[%66] : memref<5xf32, #tpu.memory_space<smem>>
    %68 = arith.addf %51, %67 : f32
    %c4_i32 = arith.constant 4 : i32
    %69 = vector.shape_cast %65 : vector<1x34xf32> to vector<1x1x34xf32>
    %cst_12 = arith.constant dense<0.000000e+00> : vector<1xf32>
    %70 = vector.multi_reduction <add>, %69, %cst_12 [1, 2] : vector<1x1x34xf32> to vector<1xf32>
    %71 = vector.shape_cast %70 : vector<1xf32> to vector<1x1x1xf32>
    %72 = vector.extract %71[0, 0, 0] : f32 from vector<1x1x1xf32>
    %cst_13 = arith.constant 9.99999974E-6 : f32
    %73 = arith.addf %68, %cst_13 : f32
    %74 = arith.divf %72, %73 : f32
    %cst_14 = arith.constant 1.000000e+00 : f32
    %75 = arith.mulf %74, %cst_14 : f32
    %c0_15 = arith.constant 0 : index
    %c0_16 = arith.constant 0 : index
    %76 = memref.load %arg7[%c0_15, %c0_16] : memref<1x1xf32, #tpu.memory_space<smem>>
    memref.store %75, %arg7[%c0_15, %c0_16] : memref<1x1xf32, #tpu.memory_space<smem>>
    return
  }
  func.func @transform_0(%arg0: i32, %arg1: memref<4xi32, #tpu.memory_space<smem>>, %arg2: memref<4xi32, #tpu.memory_space<smem>>) -> (i32, i32) {
    %c0_i32 = arith.constant 0 : i32
    %c0_i32_0 = arith.constant 0 : i32
    %c0_i32_1 = arith.constant 0 : i32
    return %c0_i32, %c0_i32_0 : i32, i32
  }
  func.func @transform_1(%arg0: i32, %arg1: memref<4xi32, #tpu.memory_space<smem>>, %arg2: memref<4xi32, #tpu.memory_space<smem>>) -> (i32, i32) {
    %c0_i32 = arith.constant 0 : i32
    %c0_i32_0 = arith.constant 0 : i32
    %c0_i32_1 = arith.constant 0 : i32
    return %c0_i32, %c0_i32_0 : i32, i32
  }
  func.func @transform_2(%arg0: i32, %arg1: memref<4xi32, #tpu.memory_space<smem>>, %arg2: memref<4xi32, #tpu.memory_space<smem>>) -> (i32, i32) {
    %c0_i32 = arith.constant 0 : i32
    %c0_i32_0 = arith.constant 0 : i32
    %c0_i32_1 = arith.constant 0 : i32
    return %c0_i32, %c0_i32_0 : i32, i32
  }
  func.func @transform_3(%arg0: i32, %arg1: memref<4xi32, #tpu.memory_space<smem>>, %arg2: memref<4xi32, #tpu.memory_space<smem>>) -> i32 {
    %c0_i32 = arith.constant 0 : i32
    %c0_i32_0 = arith.constant 0 : i32
    return %c0_i32 : i32
  }
  func.func @transform_4(%arg0: i32, %arg1: memref<4xi32, #tpu.memory_space<smem>>, %arg2: memref<4xi32, #tpu.memory_space<smem>>) -> (i32, i32) {
    %c0_i32 = arith.constant 0 : i32
    %c0_i32_0 = arith.constant 0 : i32
    %c0_i32_1 = arith.constant 0 : i32
    return %c0_i32, %c0_i32_0 : i32, i32
  }
}

</mosaic_0001>

<llo_original>
// kernel: tpu_custom_call.1
$region0: #{tpu_custom_call.1}
  #allocation0 [shape = 'u32[]', space=smem, size = 0x4, offset = 0x4, fixed_abs, tag = 'smem constant byte address 0x4 - core index']
  #allocation1 [shape = 'u32[144,128]{1,0:T(1,128)}', space=vmem, size = 0x12000, scoped, tag = 'internal scratch']
  #allocation2 [shape = 's32[1]{0}', space=sflag, size = 0x4, scoped, tag = 'scoped memory for tpu_custom_call.1']
  #allocation3 [shape = 'u8[512]{0}', space=smem, size = 0x200, scoped, tag = 'prefetched SMEM operand 0']
  #allocation4 [shape = 'u8[512]{0}', space=smem, size = 0x200, scoped, tag = 'prefetched SMEM operand 1']
  %s0 = inlined_call_operand.hbm [shape: s32[4], index: 0, kind: input, shape index: {}]
  %s1 = inlined_call_operand.vmem [shape: s32[4], index: 1, kind: input, shape index: {}]
  %s2 = inlined_call_operand.hbm [shape: f32[6,34], index: 2, kind: input, shape index: {}]
  %s3 = inlined_call_operand.hbm [shape: f32[5,34], index: 3, kind: input, shape index: {}]
  %s4 = inlined_call_operand.hbm [shape: f32[5,34], index: 4, kind: input, shape index: {}]
  %s5 = inlined_call_operand.vmem [shape: f32[5], index: 5, kind: input, shape index: {}]
  %s6 = inlined_call_operand.hbm [shape: f32[1,1], index: 6, kind: output, shape index: {}]
  %s7 = sld [smem:[#allocation0]]
  $region42: #{tpu_custom_call.1} parent=0
    _
  %s9 = ssub.s32 1, %s7
  %s10 = scalar_select 0, %s9, %s7
  %12 = dma.hbm_to_smem %s0, 16, [#allocation3], [#allocation2]
  %s13 = sshll.u32 %s1, 4
  %s14 = int_to_ptr.vmem [resolvable:$true] %s13
  %16 = dma.vmem_to_smem %s14, 16, [#allocation4], [#allocation2]
  %17 = dma.done [#allocation2], 32
  %18 = sfence
  $region1: #{tpu_custom_call.1} parent=0
    #allocation5 [shape = 'u8[4096]{0}', space=vmem, size = 0x1000, scoped, tag = 'input window, operand 2, single buffered']
    #allocation6 [shape = 's32[1]{0}', space=sflag, size = 0x4, scoped, tag = 'scoped memory for tpu_custom_call.1']
    #allocation7 [shape = 's32[1]{0}', space=sflag, size = 0x4, scoped, tag = 'scoped memory for tpu_custom_call.1']
    #allocation8 [shape = 's32[1]{0}', space=sflag, size = 0x4, scoped, tag = 'scoped memory for tpu_custom_call.1']
    #allocation9 [shape = 'u8[4096]{0}', space=vmem, size = 0x1000, scoped, tag = 'input window, operand 3, single buffered']
    #allocation10 [shape = 's32[1]{0}', space=sflag, size = 0x4, scoped, tag = 'scoped memory for tpu_custom_call.1']
    #allocation11 [shape = 'u8[4096]{0}', space=vmem, size = 0x1000, scoped, tag = 'input window, operand 4, single buffered']
    #allocation12 [shape = 'u8[512]{0}', space=smem, size = 0x200, scoped, tag = 'input window, operand 5, single buffered']
    #allocation13 [shape = 'u8[512]{0}', space=smem, size = 0x200, scoped, tag = 'output window, operand 0, single buffered']
    %19 = vsyncpa [#allocation6], 0
    %20 = vsyncpa [#allocation10], 0
    %21 = vsyncpa [#allocation8], 0
    %22 = vsyncpa [#allocation7], 0
    // Predicated region
    $region2: #{tpu_custom_call.1} parent=1 // pred_check
      _
    $region3: #{tpu_custom_call.1} parent=1 // pred_check_branch
      %24 = sbr.rel (0) target = $region5
    $region4: #{tpu_custom_call.1} parent=1 // pred_region
      %s26 = ssub.s32 128, 128
      %27 = vsyncadd [#allocation6], %s26
      %s29 = sshll.u32 [#allocation5], 4
      %s30 = int_to_ptr.vmem [resolvable:$true] %s29
      %32 = dma.hbm_to_vmem [thread:$0]  %s2, 128, %s30, [#allocation6]
    $region5: #{tpu_custom_call.1} parent=1 // pred_fallthru
      _
    // Predicated region
    $region6: #{tpu_custom_call.1} parent=1 // pred_check
      _
    $region7: #{tpu_custom_call.1} parent=1 // pred_check_branch
      %34 = sbr.rel (0) target = $region9
    $region8: #{tpu_custom_call.1} parent=1 // pred_region
      %s36 = ssub.s32 128, 128
      %37 = vsyncadd [#allocation10], %s36
      %s39 = sshll.u32 [#allocation9], 4
      %s40 = int_to_ptr.vmem [resolvable:$true] %s39
      %42 = dma.hbm_to_vmem [thread:$0]  %s3, 128, %s40, [#allocation10]
    $region9: #{tpu_custom_call.1} parent=1 // pred_fallthru
      _
    // Predicated region
    $region10: #{tpu_custom_call.1} parent=1 // pred_check
      _
    $region11: #{tpu_custom_call.1} parent=1 // pred_check_branch
      %44 = sbr.rel (0) target = $region13
    $region12: #{tpu_custom_call.1} parent=1 // pred_region
      %s46 = ssub.s32 128, 128
      %47 = vsyncadd [#allocation10], %s46
      %s49 = sshll.u32 [#allocation11], 4
      %s50 = int_to_ptr.vmem [resolvable:$true] %s49
      %52 = dma.hbm_to_vmem [thread:$0]  %s4, 128, %s50, [#allocation10]
    $region13: #{tpu_custom_call.1} parent=1 // pred_fallthru
      _
    // Predicated region
    $region14: #{tpu_custom_call.1} parent=1 // pred_check
      _
    $region15: #{tpu_custom_call.1} parent=1 // pred_check_branch
      %54 = sbr.rel (0) target = $region17
    $region16: #{tpu_custom_call.1} parent=1 // pred_region
      %s56 = ssub.s32 16, 16
      %57 = vsyncadd [#allocation8], %s56
      %s59 = sshll.u32 %s5, 4
      %s60 = int_to_ptr.vmem [resolvable:$true] %s59
      %62 = dma.vmem_to_smem %s60, 16, [#allocation12], [#allocation8]
    $region17: #{tpu_custom_call.1} parent=1 // pred_fallthru
      _
    // Predicated region
    $region18: #{tpu_custom_call.1} parent=1 // pred_check
      _
    $region19: #{tpu_custom_call.1} parent=1 // pred_check_branch
      %64 = sbr.rel (0) target = $region21
    $region20: #{tpu_custom_call.1} parent=1 // pred_region
      %65 = dma.done [#allocation6], 128
    $region21: #{tpu_custom_call.1} parent=1 // pred_fallthru
      _
    // Predicated region
    $region22: #{tpu_custom_call.1} parent=1 // pred_check
      _
    $region23: #{tpu_custom_call.1} parent=1 // pred_check_branch
      %67 = sbr.rel (0) target = $region25
    $region24: #{tpu_custom_call.1} parent=1 // pred_region
      %68 = dma.done [#allocation10], 128
    $region25: #{tpu_custom_call.1} parent=1 // pred_fallthru
      _
    // Predicated region
    $region26: #{tpu_custom_call.1} parent=1 // pred_check
      _
    $region27: #{tpu_custom_call.1} parent=1 // pred_check_branch
      %70 = sbr.rel (0) target = $region29
    $region28: #{tpu_custom_call.1} parent=1 // pred_region
      %71 = dma.done [#allocation10], 128
    $region29: #{tpu_custom_call.1} parent=1 // pred_fallthru
      _
    // Predicated region
    $region30: #{tpu_custom_call.1} parent=1 // pred_check
      _
    $region31: #{tpu_custom_call.1} parent=1 // pred_check_branch
      %73 = sbr.rel (0) target = $region33
    $region32: #{tpu_custom_call.1} parent=1 // pred_region
      %74 = dma.done [#allocation8], 16
    $region33: #{tpu_custom_call.1} parent=1 // pred_fallthru
      _
    %75 = sfence
    %s76 = sld [smem:[#allocation3]]
    %s77 = sld [smem:[#allocation4]]
    %s78 = scalar_lea.vmem [#allocation5], %s76
    %v79 = vld [vmem:[%s78] sm:$0x1]
    %s80 = scalar_lea.vmem [#allocation9], %s77
    %v81 = vld [vmem:[%s80] sm:$0x1]
    %s82 = scalar_lea.vmem [#allocation11], %s77
    %v83 = vld [vmem:[%s82] sm:$0x1]
    %v84 = vsub.f32 %v79, %v81
    %v85 = vand.u32 2147483647, %v84
    %v86 = vmul.f32 %v85, %v83
    %v87 = vadd.f32 %v86, 0.0
    %s88 = sld [smem:[#allocation12 + %s77]]
    %s89 = sadd.f32 %s88, 0.0
    %s90 = sld [smem:[#allocation3 + $0x1]]
    %s91 = sld [smem:[#allocation4 + $0x1]]
    %s92 = scalar_lea.vmem [#allocation5], %s90
    %v93 = vld [vmem:[%s92] sm:$0x1]
    %s94 = scalar_lea.vmem [#allocation9], %s91
    %v95 = vld [vmem:[%s94] sm:$0x1]
    %s96 = scalar_lea.vmem [#allocation11], %s91
    %v97 = vld [vmem:[%s96] sm:$0x1]
    %v98 = vsub.f32 %v93, %v95
    %v99 = vand.u32 2147483647, %v98
    %v100 = vmul.f32 %v99, %v97
    %v101 = vadd.f32 %v87, %v100
    %s102 = sld [smem:[#allocation12 + %s91]]
    %s103 = sadd.f32 %s89, %s102
    %s104 = sld [smem:[#allocation3 + $0x2]]
    %s105 = sld [smem:[#allocation4 + $0x2]]
    %s106 = scalar_lea.vmem [#allocation5], %s104
    %v107 = vld [vmem:[%s106] sm:$0x1]
    %s108 = scalar_lea.vmem [#allocation9], %s105
    %v109 = vld [vmem:[%s108] sm:$0x1]
    %s110 = scalar_lea.vmem [#allocation11], %s105
    %v111 = vld [vmem:[%s110] sm:$0x1]
    %v112 = vsub.f32 %v107, %v109
    %v113 = vand.u32 2147483647, %v112
    %v114 = vmul.f32 %v113, %v111
    %v115 = vadd.f32 %v101, %v114
    %s116 = sld [smem:[#allocation12 + %s105]]
    %s117 = sadd.f32 %s103, %s116
    %s118 = sld [smem:[#allocation3 + $0x3]]
    %s119 = sld [smem:[#allocation4 + $0x3]]
    %s120 = scalar_lea.vmem [#allocation5], %s118
    %v121 = vld [vmem:[%s120] sm:$0x1]
    %s122 = scalar_lea.vmem [#allocation9], %s119
    %v123 = vld [vmem:[%s122] sm:$0x1]
    %s124 = scalar_lea.vmem [#allocation11], %s119
    %v125 = vld [vmem:[%s124] sm:$0x1]
    %v126 = vsub.f32 %v121, %v123
    %v127 = vand.u32 2147483647, %v126
    %v128 = vmul.f32 %v127, %v125
    %v129 = vadd.f32 %v115, %v128
    %s130 = sld [smem:[#allocation12 + %s119]]
    %s131 = sadd.f32 %s117, %s130
    %vm132 = vcmask 270336
    %v133 = vsel %vm132, %v129, 0.0
    %134 = vadd.xlane.f32.xlu0 %v133
    %v135 = vpop.xlane.xlu0 %134
    %v136 = vrot.slane %v135, 4
    %v137 = vadd.f32 %v135, %v136
    %v138 = vrot.slane %v137, 2
    %v139 = vadd.f32 %v137, %v138
    %v140 = vrot.slane %v139, 1
    %v141 = vadd.f32 %v139, %v140
    %s142 = vtos %v141
    %s143 = sadd.f32 %s131, 1e-05
    %v144 = vstv %s143
    %v145 = vrcp.pop %v144
    %s146 = vtos %v145
    %s147 = smul.f32 %s142, %s146
    %s148 = scalar_lea.smem [#allocation13], 0
    %149 = sst [smem:[%s148]] %s147
    // Predicated region
    $region34: #{tpu_custom_call.1} parent=1 // pred_check
      _
    $region35: #{tpu_custom_call.1} parent=1 // pred_check_branch
      %151 = sbr.rel (0) target = $region37
    $region36: #{tpu_custom_call.1} parent=1 // pred_region
      %s153 = ssub.s32 16, 16
      %154 = vsyncadd [#allocation7], %s153
      %157 = dma.smem_to_hbm [#allocation13], 16, %s6, [#allocation7]
    $region37: #{tpu_custom_call.1} parent=1 // pred_fallthru
      _
    // Predicated region
    $region38: #{tpu_custom_call.1} parent=1 // pred_check
      _
    $region39: #{tpu_custom_call.1} parent=1 // pred_check_branch
      %159 = sbr.rel (0) target = $region41
    $region40: #{tpu_custom_call.1} parent=1 // pred_region
      %160 = dma.done [#allocation7], 16
    $region41: #{tpu_custom_call.1} parent=1 // pred_fallthru
      _
    %161 = sfence
    %162 = vsyncpa [#allocation6], 1
    %163 = vsyncpa [#allocation10], 1
    %164 = vsyncpa [#allocation7], 1
    %165 = vsyncpa [#allocation8], 1

</llo_original>
